<compile_context>
chip_gen: v7x
topology: tpu7x:2x2x1
jax: 0.10.0
libtpu: 0.0.40
codegen_flags: <defaults>
</compile_context>

<pallas_src>
import math

import jax
import jax.numpy as jnp
from jax.experimental import pallas as pl
from jax.experimental.pallas import tpu as pltpu


# ----------------------------- Pallas kernels --------------------------------
def _actor_kernel_base_softmax(x_ref, w1_ref, b1_ref, w2_ref, b2_ref,
                               w3_ref, b3_ref, out_ref):
    """out_ref layout: [:, :H2] = base (after leaky_relu), [:, H2:] = softmax."""
    x = x_ref[...]                                                   # (TB, D)

    h1 = jnp.dot(x, w1_ref[...], preferred_element_type=jnp.float32) + b1_ref[...]
    # dropout(p=0.4): identity in eval mode (deterministic forward)
    h2 = jnp.dot(h1, w2_ref[...], preferred_element_type=jnp.float32) + b2_ref[...]
    base = jnp.where(h2 > 0, h2, 0.01 * h2)                          # (TB, H2)

    a = jnp.dot(base, w3_ref[...], preferred_element_type=jnp.float32) + b3_ref[...]
    m = jnp.max(a, axis=-1, keepdims=True)
    e = jnp.exp(a - m)
    sm = e * pl.reciprocal(jnp.sum(e, axis=-1, keepdims=True), approx=True)

    h2_dim = base.shape[-1]                                          # static
    out_ref[:, :h2_dim] = base
    out_ref[:, h2_dim:] = sm


def _actor_kernel_logits(x_ref, w1_ref, b1_ref, w2_ref, b2_ref,
                         w3_ref, b3_ref, out_ref):
    """out_ref: raw action logits only (softmax_flag=False path)."""
    x = x_ref[...]                                                   # (TB, D)

    h1 = jnp.dot(x, w1_ref[...], preferred_element_type=jnp.float32) + b1_ref[...]
    # dropout(p=0.4): identity in eval mode
    h2 = jnp.dot(h1, w2_ref[...], preferred_element_type=jnp.float32) + b2_ref[...]
    base = jnp.where(h2 > 0, h2, 0.01 * h2)

    out_ref[...] = jnp.dot(base, w3_ref[...],
                           preferred_element_type=jnp.float32) + b3_ref[...]


# ----------------------------- wrapper ---------------------------------------
class ActorPallas:
    """Holds pre-prepped (in,out)-layout f32 params and jitted forward fns."""

    def __init__(self, w1, b1, w2, b2, w3, b3, tile_b=256):
        # One-time param prep (was previously done on every call).
        self.w1 = jnp.asarray(w1, jnp.float32).T           # (D,  H1)
        self.b1 = jnp.asarray(b1, jnp.float32).reshape(1, -1)
        self.w2 = jnp.asarray(w2, jnp.float32).T           # (H1, H2)
        self.b2 = jnp.asarray(b2, jnp.float32).reshape(1, -1)
        self.w3 = jnp.asarray(w3, jnp.float32).T           # (H2, A)
        self.b3 = jnp.asarray(b3, jnp.float32).reshape(1, -1)

        self.D, self.H1 = self.w1.shape
        self.H2 = self.w2.shape[1]
        self.A = self.w3.shape[1]
        self.tile_b = tile_b

        # softmax_flag is resolved statically: two specialized jitted forwards.
        self._fwd_softmax = jax.jit(self._forward_softmax)
        self._fwd_logits = jax.jit(self._forward_logits)

    # ---- core pallas_call (batched, grid over batch tiles) ----
    def _run(self, x2, kernel, out_cols, w1, b1, w2, b2, w3, b3):
        B = x2.shape[0]
        TB = min(self.tile_b, max(8, ((B + 7) // 8) * 8))   # f32 sublane multiple
        B_pad = ((B + TB - 1) // TB) * TB
        if B_pad != B:
            x2 = jnp.pad(x2, ((0, B_pad - B), (0, 0)))

        out = pl.pallas_call(
            kernel,
            out_shape=jax.ShapeDtypeStruct((B_pad, out_cols), jnp.float32),
            grid=(B_pad // TB,),
            in_specs=[
                pl.BlockSpec((TB, self.D), lambda i: (i, 0)),
                pl.BlockSpec((self.D, self.H1), lambda i: (0, 0)),
                pl.BlockSpec((1, self.H1), lambda i: (0, 0)),
                pl.BlockSpec((self.H1, self.H2), lambda i: (0, 0)),
                pl.BlockSpec((1, self.H2), lambda i: (0, 0)),
                pl.BlockSpec((self.H2, self.A), lambda i: (0, 0)),
                pl.BlockSpec((1, self.A), lambda i: (0, 0)),
            ],
            out_specs=pl.BlockSpec((TB, out_cols), lambda i: (i, 0)),
            compiler_params=pltpu.CompilerParams(
                dimension_semantics=("parallel",)),   # batch axis -> both TCs on v7x
        )(x2, w1, b1, w2, b2, w3, b3)
        return out[:B]

    # ---- softmax_flag=True: returns (base, softmax(action)) ----
    def _forward_softmax(self, x, w1, b1, w2, b2, w3, b3):
        squeeze = x.ndim == 1
        x2 = x.reshape(1, -1) if squeeze else x
        packed = self._run(x2, _actor_kernel_base_softmax, self.H2 + self.A,
                           w1, b1, w2, b2, w3, b3)
        base = packed[:, :self.H2]
        sm = packed[:, self.H2:]
        if squeeze:
            base, sm = base[0], sm[0]
        return base, sm

    # ---- softmax_flag=False: returns raw action logits ----
    def _forward_logits(self, x, w1, b1, w2, b2, w3, b3):
        squeeze = x.ndim == 1
        x2 = x.reshape(1, -1) if squeeze else x
        act = self._run(x2, _actor_kernel_logits, self.A,
                        w1, b1, w2, b2, w3, b3)
        if squeeze:
            act = act[0]
        return act

    def __call__(self, x, softmax_flag):
        args = (x, self.w1, self.b1, self.w2, self.b2, self.w3, self.b3)
        if softmax_flag:
            base, sm = self._fwd_softmax(*args)
            return base, sm
        act = self._fwd_logits(*args)
        return act, None


# ------------------------- deterministic param init --------------------------
def _linear_init(key, out_features, in_features):
    """PyTorch nn.Linear default init: U(-1/sqrt(fan_in), 1/sqrt(fan_in))."""
    kw, kb = jax.random.split(key)
    bound = 1.0 / math.sqrt(in_features)
    w = jax.random.uniform(kw, (out_features, in_features), jnp.float32,
                           -bound, bound)
    b = jax.random.uniform(kb, (out_features,), jnp.float32, -bound, bound)
    return w, b


if __name__ == "__main__":
    # Small module config consistent with Actor.__init__
    hidden_size1 = 32
    hidden_size2 = 32
    embeddding_total_size = 4
    window_size = 8
    num_actions = 16
    D = window_size * embeddding_total_size  # 32

    key = jax.random.PRNGKey(0)
    k_in, k_batch, k1, k2, k3 = jax.random.split(key, 5)

    w1, b1 = _linear_init(k1, hidden_size1, D)              # linear_base
    w2, b2 = _linear_init(k2, hidden_size2, hidden_size1)   # linear_finish
    w3, b3 = _linear_init(k3, num_actions, hidden_size2)    # action_layer

    actor = ActorPallas(w1, b1, w2, b2, w3, b3)

    # --- single-vector path (matches the PyTorch module exactly) ---
    x = jax.random.normal(k_in, (D,), jnp.float32)
    base_out, action_sm = actor(x, softmax_flag=True)
    action_raw, none_out = actor(x, softmax_flag=False)
    jax.block_until_ready((base_out, action_sm, action_raw))

    # --- batched path: 8 independent policy evaluations, one kernel launch ---
    xb = jax.random.normal(k_batch, (8, D), jnp.float32)
    base_b, sm_b = actor(xb, softmax_flag=True)
    jax.block_until_ready((base_b, sm_b))

    # --- pure-JAX reference (eval-mode dropout = identity) ---
    def ref_fwd(xv):
        h1 = xv @ w1.T + b1
        h2 = h1 @ w2.T + b2
        base = jnp.where(h2 > 0, h2, 0.01 * h2)
        act = base @ w3.T + b3
        return base, act

    base_ref, act_ref = ref_fwd(x)
    sm_ref = jax.nn.softmax(act_ref, axis=-1)   # == PyTorch Softmax(dim=0) on 1-D
    assert base_out.shape == (hidden_size2,) and action_sm.shape == (num_actions,)
    assert jnp.allclose(base_out, base_ref, atol=1e-4)
    assert jnp.allclose(action_raw, act_ref, atol=1e-4)
    assert jnp.allclose(action_sm, sm_ref, atol=2e-3)   # approx reciprocal in softmax
    assert none_out is None

    base_bref, act_bref = jax.vmap(ref_fwd)(xb)
    sm_bref = jax.nn.softmax(act_bref, axis=-1)
    assert jnp.allclose(base_b, base_bref, atol=1e-4)
    assert jnp.allclose(sm_b, sm_bref, atol=2e-3)

    print("KERNEL_OK")
</pallas_src>

<mosaic_0001>
module attributes {stable_mosaic.version = 11 : i64} {
  func.func @_actor_kernel_base_softmax(%arg0: i32, %arg1: memref<8x32xf32, #tpu.memory_space<vmem>>, %arg2: memref<32x32xf32, #tpu.memory_space<vmem>>, %arg3: memref<1x32xf32, #tpu.memory_space<vmem>>, %arg4: memref<32x32xf32, #tpu.memory_space<vmem>>, %arg5: memref<1x32xf32, #tpu.memory_space<vmem>>, %arg6: memref<32x16xf32, #tpu.memory_space<vmem>>, %arg7: memref<1x16xf32, #tpu.memory_space<vmem>>, %arg8: memref<8x48xf32, #tpu.memory_space<vmem>>) attributes {dimension_semantics = [#tpu.dimension_semantics<parallel>], iteration_bounds = array<i64: 1>, scalar_prefetch = 0 : i64, scratch_operands = 0 : i64, tpu.core_type = #tpu.core_type<tc>, window_params = [{transform_indices = @transform_0, window_bounds = array<i64: 8, 32>}, {pipeline_mode = #tpu.pipeline_mode<synchronous>, transform_indices = @transform_1, window_bounds = array<i64: 32, 32>}, {pipeline_mode = #tpu.pipeline_mode<synchronous>, transform_indices = @transform_2, window_bounds = array<i64: 1, 32>}, {pipeline_mode = #tpu.pipeline_mode<synchronous>, transform_indices = @transform_3, window_bounds = array<i64: 32, 32>}, {pipeline_mode = #tpu.pipeline_mode<synchronous>, transform_indices = @transform_4, window_bounds = array<i64: 1, 32>}, {pipeline_mode = #tpu.pipeline_mode<synchronous>, transform_indices = @transform_5, window_bounds = array<i64: 32, 16>}, {pipeline_mode = #tpu.pipeline_mode<synchronous>, transform_indices = @transform_6, window_bounds = array<i64: 1, 16>}, {transform_indices = @transform_7, window_bounds = array<i64: 8, 48>}]} {
    %c0 = arith.constant 0 : index
    %c0_0 = arith.constant 0 : index
    %0 = vector.load %arg1[%c0, %c0_0] : memref<8x32xf32, #tpu.memory_space<vmem>>, vector<8x32xf32>
    %c0_1 = arith.constant 0 : index
    %c0_2 = arith.constant 0 : index
    %1 = vector.load %arg2[%c0_1, %c0_2] : memref<32x32xf32, #tpu.memory_space<vmem>>, vector<32x32xf32>
    %cst = arith.constant dense<0.000000e+00> : vector<8x32xf32>
    %2 = tpu.matmul %0, %1, %cst {dimension_numbers = #tpu.dot_dimension_numbers<[1], [0], [0], [1], [0, 0, 1, 1], [], []>} : vector<8x32xf32>, vector<32x32xf32>, vector<8x32xf32> -> vector<8x32xf32>
    %c0_3 = arith.constant 0 : index
    %c0_4 = arith.constant 0 : index
    %3 = vector.load %arg3[%c0_3, %c0_4] : memref<1x32xf32, #tpu.memory_space<vmem>>, vector<1x32xf32>
    %4 = vector.broadcast %3 : vector<1x32xf32> to vector<8x32xf32>
    %5 = arith.addf %2, %4 : vector<8x32xf32>
    %c0_5 = arith.constant 0 : index
    %c0_6 = arith.constant 0 : index
    %6 = vector.load %arg4[%c0_5, %c0_6] : memref<32x32xf32, #tpu.memory_space<vmem>>, vector<32x32xf32>
    %cst_7 = arith.constant dense<0.000000e+00> : vector<8x32xf32>
    %7 = tpu.matmul %5, %6, %cst_7 {dimension_numbers = #tpu.dot_dimension_numbers<[1], [0], [0], [1], [0, 0, 1, 1], [], []>} : vector<8x32xf32>, vector<32x32xf32>, vector<8x32xf32> -> vector<8x32xf32>
    %c0_8 = arith.constant 0 : index
    %c0_9 = arith.constant 0 : index
    %8 = vector.load %arg5[%c0_8, %c0_9] : memref<1x32xf32, #tpu.memory_space<vmem>>, vector<1x32xf32>
    %9 = vector.broadcast %8 : vector<1x32xf32> to vector<8x32xf32>
    %10 = arith.addf %7, %9 : vector<8x32xf32>
    %cst_10 = arith.constant 0.000000e+00 : f32
    %11 = vector.broadcast %cst_10 : f32 to vector<8x32xf32>
    %12 = arith.cmpf ogt, %10, %11 : vector<8x32xf32>
    %cst_11 = arith.constant 0.00999999977 : f32
    %13 = vector.broadcast %cst_11 : f32 to vector<8x32xf32>
    %14 = arith.mulf %13, %10 : vector<8x32xf32>
    %15 = arith.select %12, %10, %14 : vector<8x32xi1>, vector<8x32xf32>
    %c0_12 = arith.constant 0 : index
    %c0_13 = arith.constant 0 : index
    %16 = vector.load %arg6[%c0_12, %c0_13] : memref<32x16xf32, #tpu.memory_space<vmem>>, vector<32x16xf32>
    %cst_14 = arith.constant dense<0.000000e+00> : vector<8x16xf32>
    %17 = tpu.matmul %15, %16, %cst_14 {dimension_numbers = #tpu.dot_dimension_numbers<[1], [0], [0], [1], [0, 0, 1, 1], [], []>} : vector<8x32xf32>, vector<32x16xf32>, vector<8x16xf32> -> vector<8x16xf32>
    %c0_15 = arith.constant 0 : index
    %c0_16 = arith.constant 0 : index
    %18 = vector.load %arg7[%c0_15, %c0_16] : memref<1x16xf32, #tpu.memory_space<vmem>>, vector<1x16xf32>
    %19 = vector.broadcast %18 : vector<1x16xf32> to vector<8x16xf32>
    %20 = arith.addf %17, %19 : vector<8x16xf32>
    %cst_17 = arith.constant dense<0xFF800000> : vector<8xf32>
    %21 = vector.multi_reduction <maximumf>, %20, %cst_17 [1] : vector<8x16xf32> to vector<8xf32>
    %22 = vector.shape_cast %21 : vector<8xf32> to vector<8x1xf32>
    %23 = vector.broadcast %22 : vector<8x1xf32> to vector<8x16xf32>
    %24 = arith.subf %20, %23 : vector<8x16xf32>
    %25 = math.exp %24 : vector<8x16xf32>
    %cst_18 = arith.constant dense<0.000000e+00> : vector<8xf32>
    %26 = vector.multi_reduction <add>, %25, %cst_18 [1] : vector<8x16xf32> to vector<8xf32>
    %27 = vector.shape_cast %26 : vector<8xf32> to vector<8x1xf32>
    %28 = tpu.reciprocal %27 {approx = true} : vector<8x1xf32> -> vector<8x1xf32>
    %29 = vector.broadcast %28 : vector<8x1xf32> to vector<8x16xf32>
    %30 = arith.mulf %25, %29 : vector<8x16xf32>
    %c0_19 = arith.constant 0 : index
    %c0_20 = arith.constant 0 : index
    %31 = vector.load %arg8[%c0_19, %c0_20] : memref<8x48xf32, #tpu.memory_space<vmem>>, vector<8x32xf32>
    tpu.vector_store %arg8[%c0_19, %c0_20], %15 {strides = array<i32>} : memref<8x48xf32, #tpu.memory_space<vmem>>, vector<8x32xf32>,
    %c0_21 = arith.constant 0 : index
    %c32 = arith.constant 32 : index
    %32 = vector.load %arg8[%c0_21, %c32] : memref<8x48xf32, #tpu.memory_space<vmem>>, vector<8x16xf32>
    tpu.vector_store %arg8[%c0_21, %c32], %30 {strides = array<i32>} : memref<8x48xf32, #tpu.memory_space<vmem>>, vector<8x16xf32>,
    return
  }
  func.func @transform_0(%arg0: i32) -> (i32, i32) {
    %c0_i32 = arith.constant 0 : i32
    %c0_i32_0 = arith.constant 0 : i32
    return %arg0, %c0_i32 : i32, i32
  }
  func.func @transform_1(%arg0: i32) -> (i32, i32) {
    %c0_i32 = arith.constant 0 : i32
    %c0_i32_0 = arith.constant 0 : i32
    %c0_i32_1 = arith.constant 0 : i32
    return %c0_i32, %c0_i32_0 : i32, i32
  }
  func.func @transform_2(%arg0: i32) -> (i32, i32) {
    %c0_i32 = arith.constant 0 : i32
    %c0_i32_0 = arith.constant 0 : i32
    %c0_i32_1 = arith.constant 0 : i32
    return %c0_i32, %c0_i32_0 : i32, i32
  }
  func.func @transform_3(%arg0: i32) -> (i32, i32) {
    %c0_i32 = arith.constant 0 : i32
    %c0_i32_0 = arith.constant 0 : i32
    %c0_i32_1 = arith.constant 0 : i32
    return %c0_i32, %c0_i32_0 : i32, i32
  }
  func.func @transform_4(%arg0: i32) -> (i32, i32) {
    %c0_i32 = arith.constant 0 : i32
    %c0_i32_0 = arith.constant 0 : i32
    %c0_i32_1 = arith.constant 0 : i32
    return %c0_i32, %c0_i32_0 : i32, i32
  }
  func.func @transform_5(%arg0: i32) -> (i32, i32) {
    %c0_i32 = arith.constant 0 : i32
    %c0_i32_0 = arith.constant 0 : i32
    %c0_i32_1 = arith.constant 0 : i32
    return %c0_i32, %c0_i32_0 : i32, i32
  }
  func.func @transform_6(%arg0: i32) -> (i32, i32) {
    %c0_i32 = arith.constant 0 : i32
    %c0_i32_0 = arith.constant 0 : i32
    %c0_i32_1 = arith.constant 0 : i32
    return %c0_i32, %c0_i32_0 : i32, i32
  }
  func.func @transform_7(%arg0: i32) -> (i32, i32) {
    %c0_i32 = arith.constant 0 : i32
    %c0_i32_0 = arith.constant 0 : i32
    return %arg0, %c0_i32 : i32, i32
  }
}

</mosaic_0001>

<llo_original>
// kernel: _forward_softmax.1
$region0: #{_forward_softmax.1}
  #allocation0 [shape = 'u32[]', space=smem, size = 0x4, offset = 0x4, fixed_abs, tag = 'smem constant byte address 0x4 - core index']
  #allocation1 [shape = 'u32[144,128]{1,0:T(1,128)}', space=vmem, size = 0x12000, scoped, tag = 'internal scratch']
  %s0 = inlined_call_operand.vmem [shape: f32[8,32], index: 0, kind: input, shape index: {}]
  %s1 = inlined_call_operand.vmem [shape: f32[32,32], index: 1, kind: input, shape index: {}]
  %s2 = inlined_call_operand.hbm [shape: f32[1,32], index: 2, kind: input, shape index: {}]
  %s3 = inlined_call_operand.vmem [shape: f32[32,32], index: 3, kind: input, shape index: {}]
  %s4 = inlined_call_operand.hbm [shape: f32[1,32], index: 4, kind: input, shape index: {}]
  %s5 = inlined_call_operand.vmem [shape: f32[32,16], index: 5, kind: input, shape index: {}]
  %s6 = inlined_call_operand.vmem [shape: f32[1,16], index: 6, kind: input, shape index: {}]
  %s7 = inlined_call_operand.vmem [shape: f32[8,48], index: 7, kind: output, shape index: {}]
  %s8 = sld [smem:[#allocation0]]
  $region46: #{_forward_softmax.1} parent=0
    _
  %s10 = ssub.s32 1, %s8
  %s11 = scalar_select 0, %s10, %s8
  $region1: #{_forward_softmax.1} parent=0
    #allocation2 [shape = 'u8[512]{0}', space=vmem, size = 0x400, scoped, tag = 'input window, operand 2, single buffered']
    #allocation3 [shape = 's32[1]{0}', space=sflag, size = 0x4, scoped, tag = 'scoped memory for _forward_softmax.1']
    #allocation4 [shape = 'u8[512]{0}', space=vmem, size = 0x400, scoped, tag = 'input window, operand 4, single buffered']
    #allocation5 [shape = 's32[1]{0}', space=sflag, size = 0x4, scoped, tag = 'scoped memory for _forward_softmax.1']
    %12 = vsyncpa [#allocation3], 0
    %13 = vsyncpa [#allocation5], 0
    // Predicated region
    $region2: #{_forward_softmax.1} parent=1 // pred_check
      _
    $region3: #{_forward_softmax.1} parent=1 // pred_check_branch
      %15 = sbr.rel (0) target = $region5
    $region4: #{_forward_softmax.1} parent=1 // pred_region
      _
    $region5: #{_forward_softmax.1} parent=1 // pred_fallthru
      _
    // Predicated region
    $region6: #{_forward_softmax.1} parent=1 // pred_check
      _
    $region7: #{_forward_softmax.1} parent=1 // pred_check_branch
      %17 = sbr.rel (0) target = $region9
    $region8: #{_forward_softmax.1} parent=1 // pred_region
      _
    $region9: #{_forward_softmax.1} parent=1 // pred_fallthru
      _
    // Predicated region
    $region10: #{_forward_softmax.1} parent=1 // pred_check
      _
    $region11: #{_forward_softmax.1} parent=1 // pred_check_branch
      %19 = sbr.rel (0) target = $region13
    $region12: #{_forward_softmax.1} parent=1 // pred_region
      %s21 = ssub.s32 16, 16
      %22 = vsyncadd [#allocation3], %s21
      %s24 = sshll.u32 [#allocation2], 4
      %s25 = int_to_ptr.vmem [resolvable:$true] %s24
      %27 = dma.hbm_to_vmem [thread:$0]  %s2, 16, %s25, [#allocation3]
    $region13: #{_forward_softmax.1} parent=1 // pred_fallthru
      _
    // Predicated region
    $region14: #{_forward_softmax.1} parent=1 // pred_check
      _
    $region15: #{_forward_softmax.1} parent=1 // pred_check_branch
      %29 = sbr.rel (0) target = $region17
    $region16: #{_forward_softmax.1} parent=1 // pred_region
      _
    $region17: #{_forward_softmax.1} parent=1 // pred_fallthru
      _
    // Predicated region
    $region18: #{_forward_softmax.1} parent=1 // pred_check
      _
    $region19: #{_forward_softmax.1} parent=1 // pred_check_branch
      %31 = sbr.rel (0) target = $region21
    $region20: #{_forward_softmax.1} parent=1 // pred_region
      %s33 = ssub.s32 16, 16
      %34 = vsyncadd [#allocation5], %s33
      %s36 = sshll.u32 [#allocation4], 4
      %s37 = int_to_ptr.vmem [resolvable:$true] %s36
      %39 = dma.hbm_to_vmem [thread:$0]  %s4, 16, %s37, [#allocation5]
    $region21: #{_forward_softmax.1} parent=1 // pred_fallthru
      _
    // Predicated region
    $region22: #{_forward_softmax.1} parent=1 // pred_check
      _
    $region23: #{_forward_softmax.1} parent=1 // pred_check_branch
      %41 = sbr.rel (0) target = $region25
    $region24: #{_forward_softmax.1} parent=1 // pred_region
      _
    $region25: #{_forward_softmax.1} parent=1 // pred_fallthru
      _
    // Predicated region
    $region26: #{_forward_softmax.1} parent=1 // pred_check
      _
    $region27: #{_forward_softmax.1} parent=1 // pred_check_branch
      %43 = sbr.rel (0) target = $region29
    $region28: #{_forward_softmax.1} parent=1 // pred_region
      _
    $region29: #{_forward_softmax.1} parent=1 // pred_fallthru
      _
    // Predicated region
    $region30: #{_forward_softmax.1} parent=1 // pred_check
      _
    $region31: #{_forward_softmax.1} parent=1 // pred_check_branch
      %45 = sbr.rel (0) target = $region33
    $region32: #{_forward_softmax.1} parent=1 // pred_region
      %46 = dma.done [#allocation3], 16
    $region33: #{_forward_softmax.1} parent=1 // pred_fallthru
      _
    // Predicated region
    $region34: #{_forward_softmax.1} parent=1 // pred_check
      _
    $region35: #{_forward_softmax.1} parent=1 // pred_check_branch
      %48 = sbr.rel (0) target = $region37
    $region36: #{_forward_softmax.1} parent=1 // pred_region
      %49 = dma.done [#allocation5], 16
    $region37: #{_forward_softmax.1} parent=1 // pred_fallthru
      _
    %v50 = vld [vmem:[%s0] sm:$0xff]
    %v51 = vld [vmem:[%s1] sm:$0xff]
    %v52 = vld [vmem:[%s1 + $0x8] sm:$0xff]
    %v53 = vld [vmem:[%s1 + $0x10] sm:$0xff]
    %v54 = vld [vmem:[%s1 + $0x18] sm:$0xff]
    %v55 = vld [vmem:[#allocation2] sm:$0x1]
    %v57 = vlaneseq
    %v58 = vshrl.u32 %v57, 7
    %v59 = vsub.s32 0, %v58
    %v60 = vrot.slane %v55, %v59
    %vm62 = vcmask 261120
    %v64 = vsel %vm62, %v50, 0
    %66 = vmatprep.subr.mxu0 0.0
    %67 = vmatpush1.msra.mxu0 %v51
    %68 = vmatprep.subr.mxu0 0.0
    %69 = vmatpush1.msra.mxu0 %v52
    %70 = vmatprep.subr.mxu0 0.0
    %71 = vmatpush1.msra.mxu0 %v53
    %72 = vmatprep.subr.mxu0 0.0
    %73 = vmatpush1.msra.mxu0 %v54
    %74 = vmatprep.subr.mxu0 0.0
    %75 = vmatpush1.msra.mxu0 0.0
    %76 = vmatprep.subr.mxu0 0.0
    %77 = vmatpush1.msra.mxu0 0.0
    %78 = vmatprep.subr.mxu0 0.0
    %79 = vmatpush1.msra.mxu0 0.0
    %80 = vmatprep.subr.mxu0 0.0
    %81 = vmatpush1.msra.mxu0 0.0
    %82 = vmatprep.subr.mxu0 0.0
    %83 = vmatpush1.msra.mxu0 0.0
    %84 = vmatprep.subr.mxu0 0.0
    %85 = vmatpush1.msra.mxu0 0.0
    %86 = vmatprep.subr.mxu0 0.0
    %87 = vmatpush1.msra.mxu0 0.0
    %88 = vmatprep.subr.mxu0 0.0
    %89 = vmatpush1.msra.mxu0 0.0
    %90 = vmatprep.subr.mxu0 0.0
    %91 = vmatpush1.msra.mxu0 0.0
    %92 = vmatprep.subr.mxu0 0.0
    %93 = vmatpush1.msra.mxu0 0.0
    %94 = vmatprep.subr.mxu0 0.0
    %95 = vmatpush1.msra.mxu0 0.0
    %96 = vmatprep.subr.mxu0 0.0
    %97 = vmatpush1.msra.mxu0 0.0
    %98 = vmatprep.subr.mxu0 0.0
    %99 = vmatpush1.msra.mxu0 0.0
    %100 = vmatprep.subr.mxu0 0.0
    %101 = vmatpush1.msra.mxu0 0.0
    %102 = vmatprep.subr.mxu0 0.0
    %103 = vmatpush1.msra.mxu0 0.0
    %104 = vmatprep.subr.mxu0 0.0
    %105 = vmatpush1.msra.mxu0 0.0
    %106 = vmatprep.subr.mxu0 0.0
    %107 = vmatpush1.msra.mxu0 0.0
    %108 = vmatprep.subr.mxu0 0.0
    %109 = vmatpush1.msra.mxu0 0.0
    %110 = vmatprep.subr.mxu0 0.0
    %111 = vmatpush1.msra.mxu0 0.0
    %112 = vmatprep.subr.mxu0 0.0
    %113 = vmatpush1.msra.mxu0 0.0
    %114 = vmatprep.subr.mxu0 0.0
    %115 = vmatpush1.msra.mxu0 0.0
    %116 = vmatprep.subr.mxu0 0.0
    %117 = vmatpush1.msra.mxu0 0.0
    %118 = vmatprep.subr.mxu0 0.0
    %119 = vmatpush1.msra.mxu0 0.0
    %120 = vmatprep.subr.mxu0 0.0
    %121 = vmatpush1.msra.mxu0 0.0
    %122 = vmatprep.subr.mxu0 0.0
    %123 = vmatpush1.msra.mxu0 0.0
    %124 = vmatprep.subr.mxu0 0.0
    %125 = vmatpush1.msra.mxu0 0.0
    %126 = vmatprep.subr.mxu0 0.0
    %127 = vmatpush1.msra.mxu0 0.0
    %128 = vmatprep.subr.mxu0 0.0
    %129 = vmatpush1.msra.mxu0 0.0
    %130 = vmatprep.mubr.f32.mxu0 0.0
    %131 = vmatmul.mubr.f32.gmra.mrb[0].mxu0 %v64
    %v132 = vpop.f32.mrb[0].mxu0
    %v133 = vadd.f32 %v60, %v132
    %v134 = vpop.f32.mrb[0].mxu0
    %135 = vdwg.mxu0
    %v136 = vld [vmem:[%s3] sm:$0xff]
    %v137 = vld [vmem:[%s3 + $0x8] sm:$0xff]
    %v138 = vld [vmem:[%s3 + $0x10] sm:$0xff]
    %v139 = vld [vmem:[%s3 + $0x18] sm:$0xff]
    %v140 = vld [vmem:[#allocation4] sm:$0x1]
    %v142 = vlaneseq
    %v143 = vshrl.u32 %v142, 7
    %v144 = vsub.s32 0, %v143
    %v145 = vrot.slane %v140, %v144
    %v148 = vsel %vm62, %v133, 0
    %150 = vmatprep.subr.mxu0 0.0
    %151 = vmatpush1.msra.mxu0 %v136
    %152 = vmatprep.subr.mxu0 0.0
    %153 = vmatpush1.msra.mxu0 %v137
    %154 = vmatprep.subr.mxu0 0.0
    %155 = vmatpush1.msra.mxu0 %v138
    %156 = vmatprep.subr.mxu0 0.0
    %157 = vmatpush1.msra.mxu0 %v139
    %158 = vmatprep.subr.mxu0 0.0
    %159 = vmatpush1.msra.mxu0 0.0
    %160 = vmatprep.subr.mxu0 0.0
    %161 = vmatpush1.msra.mxu0 0.0
    %162 = vmatprep.subr.mxu0 0.0
    %163 = vmatpush1.msra.mxu0 0.0
    %164 = vmatprep.subr.mxu0 0.0
    %165 = vmatpush1.msra.mxu0 0.0
    %166 = vmatprep.subr.mxu0 0.0
    %167 = vmatpush1.msra.mxu0 0.0
    %168 = vmatprep.subr.mxu0 0.0
    %169 = vmatpush1.msra.mxu0 0.0
    %170 = vmatprep.subr.mxu0 0.0
    %171 = vmatpush1.msra.mxu0 0.0
    %172 = vmatprep.subr.mxu0 0.0
    %173 = vmatpush1.msra.mxu0 0.0
    %174 = vmatprep.subr.mxu0 0.0
    %175 = vmatpush1.msra.mxu0 0.0
    %176 = vmatprep.subr.mxu0 0.0
    %177 = vmatpush1.msra.mxu0 0.0
    %178 = vmatprep.subr.mxu0 0.0
    %179 = vmatpush1.msra.mxu0 0.0
    %180 = vmatprep.subr.mxu0 0.0
    %181 = vmatpush1.msra.mxu0 0.0
    %182 = vmatprep.subr.mxu0 0.0
    %183 = vmatpush1.msra.mxu0 0.0
    %184 = vmatprep.subr.mxu0 0.0
    %185 = vmatpush1.msra.mxu0 0.0
    %186 = vmatprep.subr.mxu0 0.0
    %187 = vmatpush1.msra.mxu0 0.0
    %188 = vmatprep.subr.mxu0 0.0
    %189 = vmatpush1.msra.mxu0 0.0
    %190 = vmatprep.subr.mxu0 0.0
    %191 = vmatpush1.msra.mxu0 0.0
    %192 = vmatprep.subr.mxu0 0.0
    %193 = vmatpush1.msra.mxu0 0.0
    %194 = vmatprep.subr.mxu0 0.0
    %195 = vmatpush1.msra.mxu0 0.0
    %196 = vmatprep.subr.mxu0 0.0
    %197 = vmatpush1.msra.mxu0 0.0
    %198 = vmatprep.subr.mxu0 0.0
    %199 = vmatpush1.msra.mxu0 0.0
    %200 = vmatprep.subr.mxu0 0.0
    %201 = vmatpush1.msra.mxu0 0.0
    %202 = vmatprep.subr.mxu0 0.0
    %203 = vmatpush1.msra.mxu0 0.0
    %204 = vmatprep.subr.mxu0 0.0
    %205 = vmatpush1.msra.mxu0 0.0
    %206 = vmatprep.subr.mxu0 0.0
    %207 = vmatpush1.msra.mxu0 0.0
    %208 = vmatprep.subr.mxu0 0.0
    %209 = vmatpush1.msra.mxu0 0.0
    %210 = vmatprep.subr.mxu0 0.0
    %211 = vmatpush1.msra.mxu0 0.0
    %212 = vmatprep.subr.mxu0 0.0
    %213 = vmatpush1.msra.mxu0 0.0
    %214 = vmatprep.mubr.f32.mxu0 0.0
    %215 = vmatmul.mubr.f32.gmra.mrb[0].mxu0 %v148
    %v216 = vpop.f32.mrb[0].mxu0
    %v217 = vadd.f32 %v145, %v216
    %v218 = vpop.f32.mrb[0].mxu0
    %219 = vdwg.mxu0
    %vm220 = vcmp.gt.f32.partialorder %v217, 0.0
    %v221 = vmul.f32 %v217, 0.01
    %v222 = vsel %vm220, %v217, %v221
    %v223 = vld [vmem:[%s5] sm:$0xff]
    %v224 = vld [vmem:[%s5 + $0x8] sm:$0xff]
    %v225 = vld [vmem:[%s5 + $0x10] sm:$0xff]
    %v226 = vld [vmem:[%s5 + $0x18] sm:$0xff]
    %v227 = vld [vmem:[%s6] sm:$0x1]
    %v229 = vlaneseq
    %v230 = vshrl.u32 %v229, 7
    %v231 = vsub.s32 0, %v230
    %v232 = vrot.slane %v227, %v231
    %v235 = vsel %vm62, %v222, 0
    %237 = vmatprep.subr.mxu0 0.0
    %238 = vmatpush1.msra.mxu0 %v223
    %239 = vmatprep.subr.mxu0 0.0
    %240 = vmatpush1.msra.mxu0 %v224
    %241 = vmatprep.subr.mxu0 0.0
    %242 = vmatpush1.msra.mxu0 %v225
    %243 = vmatprep.subr.mxu0 0.0
    %244 = vmatpush1.msra.mxu0 %v226
    %245 = vmatprep.subr.mxu0 0.0
    %246 = vmatpush1.msra.mxu0 0.0
    %247 = vmatprep.subr.mxu0 0.0
    %248 = vmatpush1.msra.mxu0 0.0
    %249 = vmatprep.subr.mxu0 0.0
    %250 = vmatpush1.msra.mxu0 0.0
    %251 = vmatprep.subr.mxu0 0.0
    %252 = vmatpush1.msra.mxu0 0.0
    %253 = vmatprep.subr.mxu0 0.0
    %254 = vmatpush1.msra.mxu0 0.0
    %255 = vmatprep.subr.mxu0 0.0
    %256 = vmatpush1.msra.mxu0 0.0
    %257 = vmatprep.subr.mxu0 0.0
    %258 = vmatpush1.msra.mxu0 0.0
    %259 = vmatprep.subr.mxu0 0.0
    %260 = vmatpush1.msra.mxu0 0.0
    %261 = vmatprep.subr.mxu0 0.0
    %262 = vmatpush1.msra.mxu0 0.0
    %263 = vmatprep.subr.mxu0 0.0
    %264 = vmatpush1.msra.mxu0 0.0
    %265 = vmatprep.subr.mxu0 0.0
    %266 = vmatpush1.msra.mxu0 0.0
    %267 = vmatprep.subr.mxu0 0.0
    %268 = vmatpush1.msra.mxu0 0.0
    %269 = vmatprep.subr.mxu0 0.0
    %270 = vmatpush1.msra.mxu0 0.0
    %271 = vmatprep.subr.mxu0 0.0
    %272 = vmatpush1.msra.mxu0 0.0
    %273 = vmatprep.subr.mxu0 0.0
    %274 = vmatpush1.msra.mxu0 0.0
    %275 = vmatprep.subr.mxu0 0.0
    %276 = vmatpush1.msra.mxu0 0.0
    %277 = vmatprep.subr.mxu0 0.0
    %278 = vmatpush1.msra.mxu0 0.0
    %279 = vmatprep.subr.mxu0 0.0
    %280 = vmatpush1.msra.mxu0 0.0
    %281 = vmatprep.subr.mxu0 0.0
    %282 = vmatpush1.msra.mxu0 0.0
    %283 = vmatprep.subr.mxu0 0.0
    %284 = vmatpush1.msra.mxu0 0.0
    %285 = vmatprep.subr.mxu0 0.0
    %286 = vmatpush1.msra.mxu0 0.0
    %287 = vmatprep.subr.mxu0 0.0
    %288 = vmatpush1.msra.mxu0 0.0
    %289 = vmatprep.subr.mxu0 0.0
    %290 = vmatpush1.msra.mxu0 0.0
    %291 = vmatprep.subr.mxu0 0.0
    %292 = vmatpush1.msra.mxu0 0.0
    %293 = vmatprep.subr.mxu0 0.0
    %294 = vmatpush1.msra.mxu0 0.0
    %295 = vmatprep.subr.mxu0 0.0
    %296 = vmatpush1.msra.mxu0 0.0
    %297 = vmatprep.subr.mxu0 0.0
    %298 = vmatpush1.msra.mxu0 0.0
    %299 = vmatprep.subr.mxu0 0.0
    %300 = vmatpush1.msra.mxu0 0.0
    %301 = vmatprep.mubr.f32.mxu0 0.0
    %302 = vmatmul.mubr.f32.gmra.mrb[0].mxu0 %v235
    %v303 = vpop.f32.mrb[0].mxu0
    %v304 = vadd.f32 %v232, %v303
    %v305 = vpop.f32.mrb[0].mxu0
    %306 = vdwg.mxu0
    %vm307 = vcmask 130048
    %v308 = vsel %vm307, %v304, -inf
    %309 = vmax.xlane.f32.xlu0 %v308
    %v310 = vpop.xlane.xlu0 %309
    %v311 = vsub.f32 %v304, %v310
    %v312 = vmul.f32 %v311, 1.442695
    %v313 = vpow.pop %v312
    %v314 = vsel %vm307, %v313, 0.0
    %315 = vadd.xlane.f32.xlu0 %v314
    %v316 = vpop.xlane.xlu0 %315
    %v317 = vrcp.pop %v316
    %v318 = vmul.f32 %v313, %v317
    %319 = vst.msk [vmem:[%s7] sm:$0xff] %vm62, %v222
    %321 = vrot.lane.b32.xlu0 %v318, 32
    %v322 = vpop.permute.xlu0 %321
    %vm324 = vcmask 392448
    %325 = vst.msk [vmem:[%s7] sm:$0xff] %vm324, %v322
    // Predicated region
    $region38: #{_forward_softmax.1} parent=1 // pred_check
      _
    $region39: #{_forward_softmax.1} parent=1 // pred_check_branch
      %327 = sbr.rel (0) target = $region41
    $region40: #{_forward_softmax.1} parent=1 // pred_region
      _
    $region41: #{_forward_softmax.1} parent=1 // pred_fallthru
      _
    // Predicated region
    $region42: #{_forward_softmax.1} parent=1 // pred_check
      _
    $region43: #{_forward_softmax.1} parent=1 // pred_check_branch
      %329 = sbr.rel (0) target = $region45
    $region44: #{_forward_softmax.1} parent=1 // pred_region
      _
    $region45: #{_forward_softmax.1} parent=1 // pred_fallthru
      _
    %330 = vsyncpa [#allocation3], 1
    %331 = vsyncpa [#allocation5], 1

</llo_original>
